<compile_context>
chip_gen: v6e
topology: v6e:2x2x1
jax: 0.10.0
libtpu: 0.0.40
codegen_flags: <defaults>
</compile_context>

<pallas_src>
import functools

import jax
import jax.numpy as jnp
from jax.experimental import pallas as pl
from jax.experimental.pallas import tpu as pltpu

LN_EPS = 1e-5


def _round_up(a, b):
    return (a + b - 1) // b * b


def _tpu_budget():
    """(row_tile, vmem_limit_bytes) picked from the local chip's VMEM size."""
    try:
        cap = getattr(pltpu.get_tpu_info(), "vmem_capacity_bytes", None)
    except Exception:  # no hardware info available -> conservative defaults
        cap = None
    if cap is not None and cap >= 120 * 1024 * 1024:   # v5e / v6e: 128 MiB VMEM
        return 8192, 96 * 1024 * 1024
    return 4096, 48 * 1024 * 1024                      # v7x: 64 MiB VMEM


def pair_transition_kernel(x_ref, g_ref, b_ref, w1_ref, b1_ref, w2_ref, b2_ref,
                           o_ref, *, hidden_chunk):
    # x_ref: (tm, c_z) tile of flattened pair rows.
    x = x_ref[...].astype(jnp.float32)

    # LayerNorm over channels in f32 (v5e has no bf16 VPU).  Gamma is folded
    # into the rsqrt scale so the affine is one multiply-add on the centered x.
    mu = jnp.mean(x, axis=-1, keepdims=True)
    xc = x - mu
    var = jnp.mean(xc * xc, axis=-1, keepdims=True)
    scale = jax.lax.rsqrt(var + LN_EPS) * g_ref[...].astype(jnp.float32)
    xn_bf = (xc * scale + b_ref[...].astype(jnp.float32)).astype(jnp.bfloat16)

    hidden = w1_ref.shape[1]
    n_chunks = hidden // hidden_chunk

    # Weights arrive pre-cast to bf16; both matmuls accumulate in f32 on MXU.
    y = None
    for c in range(n_chunks):          # static unroll; n_chunks == 1 normally
        lo = c * hidden_chunk
        hi = lo + hidden_chunk
        h = jnp.dot(xn_bf, w1_ref[:, lo:hi], preferred_element_type=jnp.float32)
        h = jnp.maximum(h + b1_ref[:, lo:hi].astype(jnp.float32), 0.0)
        part = jnp.dot(h.astype(jnp.bfloat16), w2_ref[lo:hi, :],
                       preferred_element_type=jnp.float32)
        y = part if y is None else y + part

    o_ref[...] = (y + b2_ref[...].astype(jnp.float32)).astype(o_ref.dtype)


def pair_transition(z, mask, params, *, tm=None):
    """z: [B, N, N, c_z]; mask: [B, N, N] (unused, like the reference)."""
    del mask  # the reference forward() never applies the mask
    B, N1, N2, c_z = z.shape
    hidden = params["w1"].shape[1]
    M = B * N1 * N2

    tm_auto, vmem_limit = _tpu_budget()
    if tm is None:
        tm = tm_auto

    # Row tile: clamp for small inputs; keep >= 2 grid steps when M allows so
    # the ("parallel",) grid can be split across both TensorCores on v7x.
    tm_eff = min(tm, _round_up(M, 8))
    if M > 16 and pl.cdiv(M, tm_eff) < 2:
        tm_eff = _round_up(pl.cdiv(M, 2), 8)
    grid = (pl.cdiv(M, tm_eff),)  # partial last block is masked by Pallas

    x2d = z.reshape(M, c_z)  # contiguous rows -> long HBM DMA bursts, no copy

    # Chunk the hidden dim only when it is very wide; for OpenFold (<= 1024) a
    # single full-K matmul keeps the contraction inside the MXU accumulators.
    if hidden <= 1024:
        hidden_chunk = hidden
    elif hidden % 512 == 0:
        hidden_chunk = 512
    else:
        hidden_chunk = hidden

    # bf16 MXU operands: pre-cast weights once outside the kernel (halves the
    # weight DMA, removes per-step casts).  Biases / LN params stay f32.
    w1 = params["w1"].astype(jnp.bfloat16)
    w2 = params["w2"].astype(jnp.bfloat16)

    kernel = functools.partial(pair_transition_kernel,
                               hidden_chunk=hidden_chunk)

    out2d = pl.pallas_call(
        kernel,
        out_shape=jax.ShapeDtypeStruct((M, c_z), z.dtype),
        grid_spec=pltpu.PrefetchScalarGridSpec(
            num_scalar_prefetch=0,
            grid=grid,
            in_specs=[
                pl.BlockSpec((tm_eff, c_z), lambda i: (i, 0)),   # z rows
                pl.BlockSpec((1, c_z), lambda i: (0, 0)),        # ln gamma
                pl.BlockSpec((1, c_z), lambda i: (0, 0)),        # ln beta
                pl.BlockSpec((c_z, hidden), lambda i: (0, 0)),   # w1 (bf16)
                pl.BlockSpec((1, hidden), lambda i: (0, 0)),     # b1
                pl.BlockSpec((hidden, c_z), lambda i: (0, 0)),   # w2 (bf16)
                pl.BlockSpec((1, c_z), lambda i: (0, 0)),        # b2
            ],
            out_specs=pl.BlockSpec((tm_eff, c_z), lambda i: (i, 0)),
        ),
        compiler_params=pltpu.CompilerParams(
            dimension_semantics=("parallel",),
            vmem_limit_bytes=vmem_limit),
    )(
        x2d,
        params["ln_gamma"], params["ln_beta"],
        w1, params["b1"],
        w2, params["b2"],
    )

    return out2d.reshape(B, N1, N2, c_z)


def init_params(key, c_z, n, dtype=jnp.float32):
    hidden = n * c_z
    k1, k2 = jax.random.split(key, 2)
    # LayerNorm: ones / zeros (as in nn.LayerNorm).
    ln_gamma = jnp.ones((1, c_z), dtype)
    ln_beta = jnp.zeros((1, c_z), dtype)
    # linear_1: 'relu' (He) init, bias zero.  Stored as (in, out) so the kernel
    # computes x @ W, equivalent to PyTorch's x @ W^T with W of shape (out, in).
    w1 = (jax.random.normal(k1, (c_z, hidden), dtype)
          * jnp.sqrt(2.0 / c_z).astype(dtype))
    b1 = jnp.zeros((1, hidden), dtype)
    # linear_2: OpenFold 'final' init is zeros; use small deterministic random
    # values instead so this synthetic test produces non-trivial output.
    w2 = jax.random.normal(k2, (hidden, c_z), dtype) * jnp.asarray(0.02, dtype)
    b2 = jnp.zeros((1, c_z), dtype)
    return {"ln_gamma": ln_gamma, "ln_beta": ln_beta,
            "w1": w1, "b1": b1, "w2": w2, "b2": b2}


def pair_transition_ref(z, mask, params):
    """Pure-JAX f32 reference matching the PyTorch forward pass."""
    del mask
    x = z.astype(jnp.float32)
    mu = jnp.mean(x, axis=-1, keepdims=True)
    var = jnp.mean((x - mu) ** 2, axis=-1, keepdims=True)
    xn = (x - mu) / jnp.sqrt(var + LN_EPS)
    xn = xn * params["ln_gamma"][0] + params["ln_beta"][0]
    h = jnp.maximum(xn @ params["w1"] + params["b1"][0], 0.0)
    y = h @ params["w2"] + params["b2"][0]
    return y.astype(z.dtype)


if __name__ == "__main__":
    # Realistic OpenFold channel width (lane-dense c_z=128), small spatial dims.
    B, N_res, c_z, n = 2, 8, 128, 4   # hidden = 512, rows = 2*8*8 = 128

    key = jax.random.PRNGKey(0)
    kz, km, kp = jax.random.split(key, 3)
    z = jax.random.normal(kz, (B, N_res, N_res, c_z), jnp.float32)
    mask = (jax.random.uniform(km, (B, N_res, N_res)) > 0.1).astype(jnp.float32)
    params = init_params(kp, c_z, n)

    out = pair_transition(z, mask, params)
    out = jax.block_until_ready(out)

    ref = pair_transition_ref(z, mask, params)
    assert out.shape == (B, N_res, N_res, c_z)
    # bf16 MXU operands with f32 accumulation -> slightly looser tolerance.
    assert jnp.allclose(out, ref, atol=2e-2, rtol=2e-2), "mismatch vs reference"

    print("KERNEL_OK")
</pallas_src>

<mosaic_0001>
module attributes {stable_mosaic.version = 11 : i64} {
  func.func @pair_transition_kernel(%arg0: i32, %arg1: memref<64x128xf32, #tpu.memory_space<vmem>>, %arg2: memref<1x128xf32, #tpu.memory_space<vmem>>, %arg3: memref<1x128xf32, #tpu.memory_space<vmem>>, %arg4: memref<128x512xbf16, #tpu.memory_space<vmem>>, %arg5: memref<1x512xf32, #tpu.memory_space<vmem>>, %arg6: memref<512x128xbf16, #tpu.memory_space<vmem>>, %arg7: memref<1x128xf32, #tpu.memory_space<vmem>>, %arg8: memref<64x128xf32, #tpu.memory_space<vmem>>) attributes {dimension_semantics = [#tpu.dimension_semantics<parallel>], iteration_bounds = array<i64: 2>, scalar_prefetch = 0 : i64, scratch_operands = 0 : i64, tpu.core_type = #tpu.core_type<tc>, window_params = [{transform_indices = @transform_0, window_bounds = array<i64: 64, 128>}, {pipeline_mode = #tpu.pipeline_mode<synchronous>, transform_indices = @transform_1, window_bounds = array<i64: 1, 128>}, {pipeline_mode = #tpu.pipeline_mode<synchronous>, transform_indices = @transform_2, window_bounds = array<i64: 1, 128>}, {pipeline_mode = #tpu.pipeline_mode<synchronous>, transform_indices = @transform_3, window_bounds = array<i64: 128, 512>}, {pipeline_mode = #tpu.pipeline_mode<synchronous>, transform_indices = @transform_4, window_bounds = array<i64: 1, 512>}, {pipeline_mode = #tpu.pipeline_mode<synchronous>, transform_indices = @transform_5, window_bounds = array<i64: 512, 128>}, {pipeline_mode = #tpu.pipeline_mode<synchronous>, transform_indices = @transform_6, window_bounds = array<i64: 1, 128>}, {transform_indices = @transform_7, window_bounds = array<i64: 64, 128>}]} {
    %c0 = arith.constant 0 : index
    %c0_0 = arith.constant 0 : index
    %0 = vector.load %arg1[%c0, %c0_0] : memref<64x128xf32, #tpu.memory_space<vmem>>, vector<64x128xf32>
    %cst = arith.constant dense<0.000000e+00> : vector<64xf32>
    %1 = vector.multi_reduction <add>, %0, %cst [1] : vector<64x128xf32> to vector<64xf32>
    %2 = vector.shape_cast %1 : vector<64xf32> to vector<64x1xf32>
    %cst_1 = arith.constant 1.280000e+02 : f32
    %3 = vector.broadcast %cst_1 : f32 to vector<64x1xf32>
    %4 = arith.divf %2, %3 : vector<64x1xf32>
    %5 = vector.broadcast %4 : vector<64x1xf32> to vector<64x128xf32>
    %6 = arith.subf %0, %5 : vector<64x128xf32>
    %7 = arith.mulf %6, %6 : vector<64x128xf32>
    %cst_2 = arith.constant dense<0.000000e+00> : vector<64xf32>
    %8 = vector.multi_reduction <add>, %7, %cst_2 [1] : vector<64x128xf32> to vector<64xf32>
    %9 = vector.shape_cast %8 : vector<64xf32> to vector<64x1xf32>
    %cst_3 = arith.constant 1.280000e+02 : f32
    %10 = vector.broadcast %cst_3 : f32 to vector<64x1xf32>
    %11 = arith.divf %9, %10 : vector<64x1xf32>
    %cst_4 = arith.constant 9.99999974E-6 : f32
    %12 = vector.broadcast %cst_4 : f32 to vector<64x1xf32>
    %13 = arith.addf %11, %12 : vector<64x1xf32>
    %14 = math.rsqrt %13 : vector<64x1xf32>
    %c0_5 = arith.constant 0 : index
    %c0_6 = arith.constant 0 : index
    %15 = vector.load %arg2[%c0_5, %c0_6] : memref<1x128xf32, #tpu.memory_space<vmem>>, vector<1x128xf32>
    %16 = vector.broadcast %14 : vector<64x1xf32> to vector<64x128xf32>
    %17 = vector.broadcast %15 : vector<1x128xf32> to vector<64x128xf32>
    %18 = arith.mulf %16, %17 : vector<64x128xf32>
    %19 = arith.mulf %6, %18 : vector<64x128xf32>
    %c0_7 = arith.constant 0 : index
    %c0_8 = arith.constant 0 : index
    %20 = vector.load %arg3[%c0_7, %c0_8] : memref<1x128xf32, #tpu.memory_space<vmem>>, vector<1x128xf32>
    %21 = vector.broadcast %20 : vector<1x128xf32> to vector<64x128xf32>
    %22 = arith.addf %19, %21 : vector<64x128xf32>
    %23 = arith.truncf %22 : vector<64x128xf32> to vector<64x128xbf16>
    %c0_9 = arith.constant 0 : index
    %c0_10 = arith.constant 0 : index
    %24 = vector.load %arg4[%c0_9, %c0_10] : memref<128x512xbf16, #tpu.memory_space<vmem>>, vector<128x512xbf16>
    %cst_11 = arith.constant dense<0.000000e+00> : vector<64x512xf32>
    %25 = tpu.matmul %23, %24, %cst_11 {dimension_numbers = #tpu.dot_dimension_numbers<[1], [0], [0], [1], [0, 0, 1, 1], [], []>} : vector<64x128xbf16>, vector<128x512xbf16>, vector<64x512xf32> -> vector<64x512xf32>
    %c0_12 = arith.constant 0 : index
    %c0_13 = arith.constant 0 : index
    %26 = vector.load %arg5[%c0_12, %c0_13] : memref<1x512xf32, #tpu.memory_space<vmem>>, vector<1x512xf32>
    %27 = vector.broadcast %26 : vector<1x512xf32> to vector<64x512xf32>
    %28 = arith.addf %25, %27 : vector<64x512xf32>
    %cst_14 = arith.constant 0.000000e+00 : f32
    %29 = vector.broadcast %cst_14 : f32 to vector<64x512xf32>
    %30 = arith.maximumf %28, %29 : vector<64x512xf32>
    %31 = arith.truncf %30 : vector<64x512xf32> to vector<64x512xbf16>
    %c0_15 = arith.constant 0 : index
    %c0_16 = arith.constant 0 : index
    %32 = vector.load %arg6[%c0_15, %c0_16] : memref<512x128xbf16, #tpu.memory_space<vmem>>, vector<512x128xbf16>
    %cst_17 = arith.constant dense<0.000000e+00> : vector<64x128xf32>
    %33 = tpu.matmul %31, %32, %cst_17 {dimension_numbers = #tpu.dot_dimension_numbers<[1], [0], [0], [1], [0, 0, 1, 1], [], []>} : vector<64x512xbf16>, vector<512x128xbf16>, vector<64x128xf32> -> vector<64x128xf32>
    %c0_18 = arith.constant 0 : index
    %c0_19 = arith.constant 0 : index
    %34 = vector.load %arg7[%c0_18, %c0_19] : memref<1x128xf32, #tpu.memory_space<vmem>>, vector<1x128xf32>
    %35 = vector.broadcast %34 : vector<1x128xf32> to vector<64x128xf32>
    %36 = arith.addf %33, %35 : vector<64x128xf32>
    %c0_20 = arith.constant 0 : index
    %c0_21 = arith.constant 0 : index
    %37 = vector.load %arg8[%c0_20, %c0_21] : memref<64x128xf32, #tpu.memory_space<vmem>>, vector<64x128xf32>
    tpu.vector_store %arg8[%c0_20, %c0_21], %36 {strides = array<i32>} : memref<64x128xf32, #tpu.memory_space<vmem>>, vector<64x128xf32>,
    return
  }
  func.func @transform_0(%arg0: i32) -> (i32, i32) {
    %c0_i32 = arith.constant 0 : i32
    %c0_i32_0 = arith.constant 0 : i32
    return %arg0, %c0_i32 : i32, i32
  }
  func.func @transform_1(%arg0: i32) -> (i32, i32) {
    %c0_i32 = arith.constant 0 : i32
    %c0_i32_0 = arith.constant 0 : i32
    %c0_i32_1 = arith.constant 0 : i32
    return %c0_i32, %c0_i32_0 : i32, i32
  }
  func.func @transform_2(%arg0: i32) -> (i32, i32) {
    %c0_i32 = arith.constant 0 : i32
    %c0_i32_0 = arith.constant 0 : i32
    %c0_i32_1 = arith.constant 0 : i32
    return %c0_i32, %c0_i32_0 : i32, i32
  }
  func.func @transform_3(%arg0: i32) -> (i32, i32) {
    %c0_i32 = arith.constant 0 : i32
    %c0_i32_0 = arith.constant 0 : i32
    %c0_i32_1 = arith.constant 0 : i32
    return %c0_i32, %c0_i32_0 : i32, i32
  }
  func.func @transform_4(%arg0: i32) -> (i32, i32) {
    %c0_i32 = arith.constant 0 : i32
    %c0_i32_0 = arith.constant 0 : i32
    %c0_i32_1 = arith.constant 0 : i32
    return %c0_i32, %c0_i32_0 : i32, i32
  }
  func.func @transform_5(%arg0: i32) -> (i32, i32) {
    %c0_i32 = arith.constant 0 : i32
    %c0_i32_0 = arith.constant 0 : i32
    %c0_i32_1 = arith.constant 0 : i32
    return %c0_i32, %c0_i32_0 : i32, i32
  }
  func.func @transform_6(%arg0: i32) -> (i32, i32) {
    %c0_i32 = arith.constant 0 : i32
    %c0_i32_0 = arith.constant 0 : i32
    %c0_i32_1 = arith.constant 0 : i32
    return %c0_i32, %c0_i32_0 : i32, i32
  }
  func.func @transform_7(%arg0: i32) -> (i32, i32) {
    %c0_i32 = arith.constant 0 : i32
    %c0_i32_0 = arith.constant 0 : i32
    return %arg0, %c0_i32 : i32, i32
  }
}

</mosaic_0001>

<llo_original>
// kernel: tpu_custom_call.1
$region0: #{tpu_custom_call.1}
  #allocation0 [shape = 'u32[]', space=smem, size = 0x4, offset = 0x4, fixed_abs, tag = 'smem constant byte address 0x4 - core index']
  #allocation1 [shape = 'u32[144,128]{1,0:T(1,128)}', space=vmem, size = 0x12000, scoped, tag = 'internal scratch']
  %s0 = inlined_call_operand.hbm [shape: f32[128,128], index: 0, kind: input, shape index: {}]
  %s1 = inlined_call_operand.vmem [shape: f32[1,128], index: 1, kind: input, shape index: {}]
  %s2 = inlined_call_operand.vmem [shape: f32[1,128], index: 2, kind: input, shape index: {}]
  %s3 = inlined_call_operand.hbm [shape: bf16[128,512], index: 3, kind: input, shape index: {}]
  %s4 = inlined_call_operand.vmem [shape: f32[1,512], index: 4, kind: input, shape index: {}]
  %s5 = inlined_call_operand.hbm [shape: bf16[512,128], index: 5, kind: input, shape index: {}]
  %s6 = inlined_call_operand.vmem [shape: f32[1,128], index: 6, kind: input, shape index: {}]
  %s7 = inlined_call_operand.hbm [shape: f32[128,128], index: 7, kind: output, shape index: {}]
  %s8 = sld [smem:[#allocation0]]
  $region73: #{tpu_custom_call.1} parent=0
    _
  %s10 = ssub.s32 1, %s8
  %s11 = scalar_select 0, %s10, %s8
  $region1: #{tpu_custom_call.1} parent=0
    #allocation2 [shape = 'u8[65536]{0}', space=vmem, size = 0x10000, scoped, tag = 'input window, operand 0']
    #allocation3 [shape = 's32[2]{0}', space=sflag, size = 0x8, scoped, tag = 'scoped memory for tpu_custom_call.1']
    #allocation4 [shape = 's32[2]{0}', space=sflag, size = 0x8, scoped, tag = 'scoped memory for tpu_custom_call.1']
    #allocation5 [shape = 'u8[131072]{0}', space=vmem, size = 0x20000, scoped, tag = 'input window, operand 3, single buffered']
    #allocation6 [shape = 's32[1]{0}', space=sflag, size = 0x4, scoped, tag = 'scoped memory for tpu_custom_call.1']
    #allocation7 [shape = 'u8[131072]{0}', space=vmem, size = 0x20000, scoped, tag = 'input window, operand 5, single buffered']
    #allocation8 [shape = 'u8[65536]{0}', space=vmem, size = 0x10000, scoped, tag = 'output window, operand 0']
    %12 = vsyncpa [#allocation3], 0
    %s13 = scalar_lea.sflag [#allocation3], 1
    %14 = vsyncpa %s13, 0
    %15 = vsyncpa [#allocation6], 0
    %16 = vsyncpa [#allocation4], 0
    %s17 = scalar_lea.sflag [#allocation4], 1
    %18 = vsyncpa %s17, 0
    loop: start=0, step=1, limit=4
    $region2: #{tpu_custom_call.1} parent=1 // loop_pre_header
      _
    $region3: #{tpu_custom_call.1} parent=1 // loop_header
      %s20 = sphi 0, %s24
      %p21 = scmp.ge.s32.totalorder %s20, 4
      %s30 = sphi 0, %s32
      %s33 = sphi 0, %s30
      %s34 = sphi 0, %s33
      %s50 = sphi 0, %s34
      %s54 = sphi 0, %s54
      %s56 = sphi 0, %s54
      %s57 = sphi 0, %s56
      %s71 = sphi 0, %s57
      %s75 = sphi 0, %s75
      %s77 = sphi 0, %s75
      %s78 = sphi 0, %s77
      %s92 = sphi 0, %s78
      %s96 = sphi 0, %s96
      %s98 = sphi 0, %s96
      %s99 = sphi 0, %s98
      %s113 = sphi 0, %s99
      %s117 = sphi 0, %s117
      %s119 = sphi 0, %s117
      %s120 = sphi 0, %s119
      %s134 = sphi 0, %s120
      %s138 = sphi 0, %s138
      %s140 = sphi 0, %s138
      %s141 = sphi 0, %s140
      %s155 = sphi 0, %s141
      %s159 = sphi 0, %s159
      %s161 = sphi 0, %s159
      %s162 = sphi 0, %s161
      %s176 = sphi 0, %s162
      %s182 = sphi 0, %s184
      %s185 = sphi 0, %s182
      %s186 = sphi 0, %s185
      %s202 = sphi 0, %s186
    $region4: #{tpu_custom_call.1} parent=1 // loop_header_branch
      %23 = sbr.rel (%p21) target = $region8
    $region5: #{tpu_custom_call.1} parent=1 // loop_body
      %s25 = ssub.s32 %s20, 1
      %s26 = ssub.s32 %s20, 2
      %s27 = sadd.s32 %s20, 1
      %s28 = ssub.s32 %s20, %s27
      %p29 = scmp.eq.s32.totalorder %s28, 0
      %s31 = sadd.s32 %s30, 1
      %s32 = scalar_select %p29, %s30, %s31
      %p35 = pneg %p29
      %p36 = scmp.eq.s32.totalorder %s20, 1
      %p37 = por %p35, %p36
      %p38 = scmp.ne.s32.totalorder %s30, %s33
      %p39 = scmp.eq.s32.totalorder %s20, 0
      %p40 = por %p38, %p39
      %p41 = scmp.ne.s32.totalorder %s30, %s33
      %p42 = scmp.eq.s32.totalorder %s25, 1
      %p43 = por %p41, %p42
      %p44 = scmp.ne.s32.totalorder %s33, %s34
      %p45 = scmp.eq.s32.totalorder %s25, 0
      %p46 = por %p44, %p45
      %p47 = scmp.ne.s32.totalorder %s33, %s34
      %p48 = scmp.eq.s32.totalorder %s26, 1
      %p49 = por %p47, %p48
      %p51 = scmp.ne.s32.totalorder %s34, %s50
      %p52 = scmp.eq.s32.totalorder %s26, 0
      %p53 = por %p51, %p52
      %s55 = sadd.s32 %s54, 1
      %p58 = scmp.eq.s32.totalorder %s20, 1
      %p59 = scmp.ne.s32.totalorder %s54, %s56
      %p60 = scmp.eq.s32.totalorder %s20, 0
      %p61 = por %p59, %p60
      %p62 = scmp.ne.s32.totalorder %s54, %s56
      %p63 = scmp.eq.s32.totalorder %s25, 1
      %p64 = por %p62, %p63
      %p65 = scmp.ne.s32.totalorder %s56, %s57
      %p66 = scmp.eq.s32.totalorder %s25, 0
      %p67 = por %p65, %p66
      %p68 = scmp.ne.s32.totalorder %s56, %s57
      %p69 = scmp.eq.s32.totalorder %s26, 1
      %p70 = por %p68, %p69
      %p72 = scmp.ne.s32.totalorder %s57, %s71
      %p73 = scmp.eq.s32.totalorder %s26, 0
      %p74 = por %p72, %p73
      %s76 = sadd.s32 %s75, 1
      %p79 = scmp.eq.s32.totalorder %s20, 1
      %p80 = scmp.ne.s32.totalorder %s75, %s77
      %p81 = scmp.eq.s32.totalorder %s20, 0
      %p82 = por %p80, %p81
      %p83 = scmp.ne.s32.totalorder %s75, %s77
      %p84 = scmp.eq.s32.totalorder %s25, 1
      %p85 = por %p83, %p84
      %p86 = scmp.ne.s32.totalorder %s77, %s78
      %p87 = scmp.eq.s32.totalorder %s25, 0
      %p88 = por %p86, %p87
      %p89 = scmp.ne.s32.totalorder %s77, %s78
      %p90 = scmp.eq.s32.totalorder %s26, 1
      %p91 = por %p89, %p90
      %p93 = scmp.ne.s32.totalorder %s78, %s92
      %p94 = scmp.eq.s32.totalorder %s26, 0
      %p95 = por %p93, %p94
      %s97 = sadd.s32 %s96, 1
      %p100 = scmp.eq.s32.totalorder %s20, 1
      %p101 = scmp.ne.s32.totalorder %s96, %s98
      %p102 = scmp.eq.s32.totalorder %s20, 0
      %p103 = por %p101, %p102
      %p104 = scmp.ne.s32.totalorder %s96, %s98
      %p105 = scmp.eq.s32.totalorder %s25, 1
      %p106 = por %p104, %p105
      %p107 = scmp.ne.s32.totalorder %s98, %s99
      %p108 = scmp.eq.s32.totalorder %s25, 0
      %p109 = por %p107, %p108
      %p110 = scmp.ne.s32.totalorder %s98, %s99
      %p111 = scmp.eq.s32.totalorder %s26, 1
      %p112 = por %p110, %p111
      %p114 = scmp.ne.s32.totalorder %s99, %s113
      %p115 = scmp.eq.s32.totalorder %s26, 0
      %p116 = por %p114, %p115
      %s118 = sadd.s32 %s117, 1
      %p121 = scmp.eq.s32.totalorder %s20, 1
      %p122 = scmp.ne.s32.totalorder %s117, %s119
      %p123 = scmp.eq.s32.totalorder %s20, 0
      %p124 = por %p122, %p123
      %p125 = scmp.ne.s32.totalorder %s117, %s119
      %p126 = scmp.eq.s32.totalorder %s25, 1
      %p127 = por %p125, %p126
      %p128 = scmp.ne.s32.totalorder %s119, %s120
      %p129 = scmp.eq.s32.totalorder %s25, 0
      %p130 = por %p128, %p129
      %p131 = scmp.ne.s32.totalorder %s119, %s120
      %p132 = scmp.eq.s32.totalorder %s26, 1
      %p133 = por %p131, %p132
      %p135 = scmp.ne.s32.totalorder %s120, %s134
      %p136 = scmp.eq.s32.totalorder %s26, 0
      %p137 = por %p135, %p136
      %s139 = sadd.s32 %s138, 1
      %p142 = scmp.eq.s32.totalorder %s20, 1
      %p143 = scmp.ne.s32.totalorder %s138, %s140
      %p144 = scmp.eq.s32.totalorder %s20, 0
      %p145 = por %p143, %p144
      %p146 = scmp.ne.s32.totalorder %s138, %s140
      %p147 = scmp.eq.s32.totalorder %s25, 1
      %p148 = por %p146, %p147
      %p149 = scmp.ne.s32.totalorder %s140, %s141
      %p150 = scmp.eq.s32.totalorder %s25, 0
      %p151 = por %p149, %p150
      %p152 = scmp.ne.s32.totalorder %s140, %s141
      %p153 = scmp.eq.s32.totalorder %s26, 1
      %p154 = por %p152, %p153
      %p156 = scmp.ne.s32.totalorder %s141, %s155
      %p157 = scmp.eq.s32.totalorder %s26, 0
      %p158 = por %p156, %p157
      %s160 = sadd.s32 %s159, 1
      %p163 = scmp.eq.s32.totalorder %s20, 1
      %p164 = scmp.ne.s32.totalorder %s159, %s161
      %p165 = scmp.eq.s32.totalorder %s20, 0
      %p166 = por %p164, %p165
      %p167 = scmp.ne.s32.totalorder %s159, %s161
      %p168 = scmp.eq.s32.totalorder %s25, 1
      %p169 = por %p167, %p168
      %p170 = scmp.ne.s32.totalorder %s161, %s162
      %p171 = scmp.eq.s32.totalorder %s25, 0
      %p172 = por %p170, %p171
      %p173 = scmp.ne.s32.totalorder %s161, %s162
      %p174 = scmp.eq.s32.totalorder %s26, 1
      %p175 = por %p173, %p174
      %p177 = scmp.ne.s32.totalorder %s162, %s176
      %p178 = scmp.eq.s32.totalorder %s26, 0
      %p179 = por %p177, %p178
      %s180 = ssub.s32 %s20, %s27
      %p181 = scmp.eq.s32.totalorder %s180, 0
      %s183 = sadd.s32 %s182, 1
      %s184 = scalar_select %p181, %s182, %s183
      %p187 = pneg %p181
      %p188 = scmp.eq.s32.totalorder %s20, 1
      %p189 = por %p187, %p188
      %p190 = scmp.ne.s32.totalorder %s182, %s185
      %p191 = scmp.eq.s32.totalorder %s20, 0
      %p192 = por %p190, %p191
      %p193 = scmp.ne.s32.totalorder %s182, %s185
      %p194 = scmp.eq.s32.totalorder %s25, 1
      %p195 = por %p193, %p194
      %p196 = scmp.ne.s32.totalorder %s185, %s186
      %p197 = scmp.eq.s32.totalorder %s25, 0
      %p198 = por %p196, %p197
      %p199 = scmp.ne.s32.totalorder %s185, %s186
      %p200 = scmp.eq.s32.totalorder %s26, 1
      %p201 = por %p199, %p200
      %p203 = scmp.ne.s32.totalorder %s186, %s202
      %p204 = scmp.eq.s32.totalorder %s26, 0
      %p205 = por %p203, %p204
      %p206 = scmp.le.s32.totalorder 1, %s20
      %p207 = scmp.lt.s32.totalorder %s20, 3
      %p208 = pnand %p206, %p207
      %p209 = pneg %p208
      // Predicated region
      $region9: #{tpu_custom_call.1} parent=5 // pred_check
        _
      $region10: #{tpu_custom_call.1} parent=5 // pred_check_branch
        %211 = sbr.rel (%p208) target = $region12
      $region11: #{tpu_custom_call.1} parent=5 // pred_region
        %s212 = ssub.s32 %s20, 1
        // Predicated region
        $region13: #{tpu_custom_call.1} parent=11 // pred_check
          %p213 = pneg %p67
        $region14: #{tpu_custom_call.1} parent=11 // pred_check_branch
          %215 = sbr.rel (%p213) target = $region16
        $region15: #{tpu_custom_call.1} parent=11 // pred_region
          _
        $region16: #{tpu_custom_call.1} parent=11 // pred_fallthru
          _
        // Predicated region
        $region17: #{tpu_custom_call.1} parent=11 // pred_check
          %p216 = pneg %p88
        $region18: #{tpu_custom_call.1} parent=11 // pred_check_branch
          %218 = sbr.rel (%p216) target = $region20
        $region19: #{tpu_custom_call.1} parent=11 // pred_region
          _
        $region20: #{tpu_custom_call.1} parent=11 // pred_fallthru
          _
        // Predicated region
        $region21: #{tpu_custom_call.1} parent=11 // pred_check
          %p219 = pneg %p109
        $region22: #{tpu_custom_call.1} parent=11 // pred_check_branch
          %221 = sbr.rel (%p219) target = $region24
        $region23: #{tpu_custom_call.1} parent=11 // pred_region
          %s223 = ssub.s32 4096, 4096
          %224 = vsyncadd [#allocation6], %s223
          %s225 = sshll.u32 [#allocation5], 4
          %s226 = int_to_ptr.vmem [resolvable:$true] %s225
          %231 = dma.hbm_to_vmem [thread:$0]  %s3, 4096, %s226, [#allocation6], 256, 256, 16
        $region24: #{tpu_custom_call.1} parent=11 // pred_fallthru
          _
        // Predicated region
        $region25: #{tpu_custom_call.1} parent=11 // pred_check
          %p232 = pneg %p130
        $region26: #{tpu_custom_call.1} parent=11 // pred_check_branch
          %234 = sbr.rel (%p232) target = $region28
        $region27: #{tpu_custom_call.1} parent=11 // pred_region
          _
        $region28: #{tpu_custom_call.1} parent=11 // pred_fallthru
          _
        // Predicated region
        $region29: #{tpu_custom_call.1} parent=11 // pred_check
          %p235 = pneg %p151
        $region30: #{tpu_custom_call.1} parent=11 // pred_check_branch
          %237 = sbr.rel (%p235) target = $region32
        $region31: #{tpu_custom_call.1} parent=11 // pred_region
          %s239 = ssub.s32 4096, 4096
          %240 = vsyncadd [#allocation6], %s239
          %s241 = sshll.u32 [#allocation7], 4
          %s242 = int_to_ptr.vmem [resolvable:$true] %s241
          %247 = dma.hbm_to_vmem [thread:$0]  %s5, 4096, %s242, [#allocation6], 64, 64, 4
        $region32: #{tpu_custom_call.1} parent=11 // pred_fallthru
          _
        // Predicated region
        $region33: #{tpu_custom_call.1} parent=11 // pred_check
          %p248 = pneg %p172
        $region34: #{tpu_custom_call.1} parent=11 // pred_check_branch
          %250 = sbr.rel (%p248) target = $region36
        $region35: #{tpu_custom_call.1} parent=11 // pred_region
          _
        $region36: #{tpu_custom_call.1} parent=11 // pred_fallthru
          _
      $region12: #{tpu_custom_call.1} parent=5 // pred_fallthru
        _
      %p251 = scmp.lt.s32.totalorder %s20, 2
      // Predicated region
      $region37: #{tpu_custom_call.1} parent=5 // pred_check
        %p252 = pneg %p251
      $region38: #{tpu_custom_call.1} parent=5 // pred_check_branch
        %254 = sbr.rel (%p252) target = $region40
      $region39: #{tpu_custom_call.1} parent=5 // pred_region
        // Predicated region
        $region41: #{tpu_custom_call.1} parent=39 // pred_check
          %p255 = pneg %p40
        $region42: #{tpu_custom_call.1} parent=39 // pred_check_branch
          %257 = sbr.rel (%p255) target = $region44
        $region43: #{tpu_custom_call.1} parent=39 // pred_region
          %s258 = sand.u32 %s30, 1
          %s259 = scalar_lea.sflag [#allocation3], %s258
          %s260 = sand.u32 %s30, 1
          %s261 = smul.addr %s260, 64
          %s262 = scalar_lea.vmem [#allocation2], %s261
          %s263 = smul.u32 8, %s20
          %s265 = ssub.s32 1024, 1024
          %266 = vsyncadd %s259, %s265
          %s267 = smul.addr %s263, 128
          %s268 = scalar_lea.hbm %s0, %s267
          %s269 = sshll.u32 %s262, 4
          %s270 = int_to_ptr.vmem [resolvable:$true] %s269
          %275 = dma.hbm_to_vmem [thread:$0]  %s268, 1024, %s270, %s259, 128, 128, 8
        $region44: #{tpu_custom_call.1} parent=39 // pred_fallthru
          _
      $region40: #{tpu_custom_call.1} parent=5 // pred_fallthru
        _
      %p276 = scmp.le.s32.totalorder 1, %s20
      %p277 = scmp.lt.s32.totalorder %s20, 3
      %p278 = pnand %p276, %p277
      %p279 = pneg %p278
      // Predicated region
      $region45: #{tpu_custom_call.1} parent=5 // pred_check
        _
      $region46: #{tpu_custom_call.1} parent=5 // pred_check_branch
        %281 = sbr.rel (%p278) target = $region48
      $region47: #{tpu_custom_call.1} parent=5 // pred_region
        %s282 = ssub.s32 %s20, 1
        %s283 = sand.u32 %s33, 1
        %s284 = scalar_lea.sflag [#allocation3], %s283
        %s285 = sand.u32 %s33, 1
        %s286 = smul.addr %s285, 64
        %s287 = scalar_lea.vmem [#allocation2], %s286
        // Predicated region
        $region49: #{tpu_custom_call.1} parent=47 // pred_check
          %p288 = pneg %p46
        $region50: #{tpu_custom_call.1} parent=47 // pred_check_branch
          %290 = sbr.rel (%p288) target = $region52
        $region51: #{tpu_custom_call.1} parent=47 // pred_region
          %291 = dma.done %s284, 1024
        $region52: #{tpu_custom_call.1} parent=47 // pred_fallthru
          _
        // Predicated region
        $region53: #{tpu_custom_call.1} parent=47 // pred_check
          %p292 = pneg %p109
        $region54: #{tpu_custom_call.1} parent=47 // pred_check_branch
          %294 = sbr.rel (%p292) target = $region56
        $region55: #{tpu_custom_call.1} parent=47 // pred_region
          %295 = dma.done [#allocation6], 4096
        $region56: #{tpu_custom_call.1} parent=47 // pred_fallthru
          _
        // Predicated region
        $region57: #{tpu_custom_call.1} parent=47 // pred_check
          %p296 = pneg %p151
        $region58: #{tpu_custom_call.1} parent=47 // pred_check_branch
          %298 = sbr.rel (%p296) target = $region60
        $region59: #{tpu_custom_call.1} parent=47 // pred_region
          %299 = dma.done [#allocation6], 4096
        $region60: #{tpu_custom_call.1} parent=47 // pred_fallthru
          _
        %s300 = sand.u32 %s33, 1
        %s301 = scalar_lea.sflag [#allocation3], %s300
        %s302 = sand.u32 %s33, 1
        %s303 = smul.addr %s302, 64
        %s304 = scalar_lea.vmem [#allocation2], %s303
        %p305 = pneg %p46
        %p306 = pneg %p43
        %p307 = pneg %p67
        %p308 = pneg %p64
        %p309 = pneg %p88
        %p310 = pneg %p85
        %p311 = pneg %p109
        %p312 = pneg %p106
        %p313 = pneg %p130
        %p314 = pneg %p127
        %p315 = pneg %p151
        %p316 = pneg %p148
        %p317 = pneg %p172
        %p318 = pneg %p169
        %p319 = pneg %p198
        %p320 = pneg %p195
        %s321 = sand.u32 %s185, 1
        %s322 = scalar_lea.sflag [#allocation4], %s321
        %s323 = sand.u32 %s185, 1
        %s324 = smul.addr %s323, 64
        %s325 = scalar_lea.vmem [#allocation8], %s324
        %s326 = smul.u32 8, %s25
        %s327 = smul.u32 8, %s25
        %v329 = vld [vmem:[%s287] sm:$0xff]
        %v330 = vld [vmem:[%s287 + $0x8] sm:$0xff]
        %v331 = vld [vmem:[%s287 + $0x10] sm:$0xff]
        %v332 = vld [vmem:[%s287 + $0x18] sm:$0xff]
        %v333 = vld [vmem:[%s287 + $0x20] sm:$0xff]
        %v334 = vld [vmem:[%s287 + $0x28] sm:$0xff]
        %v335 = vld [vmem:[%s287 + $0x30] sm:$0xff]
        %v336 = vld [vmem:[%s287 + $0x38] sm:$0xff]
        %337 = vadd.xlane.f32.xlu0 %v329
        %v338 = vpop.xlane.xlu0 %337
        %339 = vadd.xlane.f32.xlu0 %v330
        %v340 = vpop.xlane.xlu0 %339
        %341 = vadd.xlane.f32.xlu0 %v331
        %v342 = vpop.xlane.xlu0 %341
        %343 = vadd.xlane.f32.xlu0 %v332
        %v344 = vpop.xlane.xlu0 %343
        %345 = vadd.xlane.f32.xlu0 %v333
        %v346 = vpop.xlane.xlu0 %345
        %347 = vadd.xlane.f32.xlu0 %v334
        %v348 = vpop.xlane.xlu0 %347
        %349 = vadd.xlane.f32.xlu0 %v335
        %v350 = vpop.xlane.xlu0 %349
        %351 = vadd.xlane.f32.xlu0 %v336
        %v352 = vpop.xlane.xlu0 %351
        %v353 = vrcp.pop 128.0
        %v354 = vmul.f32 %v338, %v353
        %v355 = vmul.f32 %v340, %v353
        %v356 = vmul.f32 %v342, %v353
        %v357 = vmul.f32 %v344, %v353
        %v358 = vmul.f32 %v346, %v353
        %v359 = vmul.f32 %v348, %v353
        %v360 = vmul.f32 %v350, %v353
        %v361 = vmul.f32 %v352, %v353
        %v362 = vsub.f32 %v329, %v354
        %v363 = vsub.f32 %v330, %v355
        %v364 = vsub.f32 %v331, %v356
        %v365 = vsub.f32 %v332, %v357
        %v366 = vsub.f32 %v333, %v358
        %v367 = vsub.f32 %v334, %v359
        %v368 = vsub.f32 %v335, %v360
        %v369 = vsub.f32 %v336, %v361
        %v370 = vmul.f32 %v362, %v362
        %v371 = vmul.f32 %v363, %v363
        %v372 = vmul.f32 %v364, %v364
        %v373 = vmul.f32 %v365, %v365
        %v374 = vmul.f32 %v366, %v366
        %v375 = vmul.f32 %v367, %v367
        %v376 = vmul.f32 %v368, %v368
        %v377 = vmul.f32 %v369, %v369
        %378 = vadd.xlane.f32.xlu0 %v370
        %v379 = vpop.xlane.xlu0 %378
        %380 = vadd.xlane.f32.xlu0 %v371
        %v381 = vpop.xlane.xlu0 %380
        %382 = vadd.xlane.f32.xlu0 %v372
        %v383 = vpop.xlane.xlu0 %382
        %384 = vadd.xlane.f32.xlu0 %v373
        %v385 = vpop.xlane.xlu0 %384
        %386 = vadd.xlane.f32.xlu0 %v374
        %v387 = vpop.xlane.xlu0 %386
        %388 = vadd.xlane.f32.xlu0 %v375
        %v389 = vpop.xlane.xlu0 %388
        %390 = vadd.xlane.f32.xlu0 %v376
        %v391 = vpop.xlane.xlu0 %390
        %392 = vadd.xlane.f32.xlu0 %v377
        %v393 = vpop.xlane.xlu0 %392
        %v394 = vmul.f32 %v379, %v353
        %v395 = vmul.f32 %v381, %v353
        %v396 = vmul.f32 %v383, %v353
        %v397 = vmul.f32 %v385, %v353
        %v398 = vmul.f32 %v387, %v353
        %v399 = vmul.f32 %v389, %v353
        %v400 = vmul.f32 %v391, %v353
        %v401 = vmul.f32 %v393, %v353
        %v402 = vadd.f32 %v394, 1e-05
        %v403 = vadd.f32 %v395, 1e-05
        %v404 = vadd.f32 %v396, 1e-05
        %v405 = vadd.f32 %v397, 1e-05
        %v406 = vadd.f32 %v398, 1e-05
        %v407 = vadd.f32 %v399, 1e-05
        %v408 = vadd.f32 %v400, 1e-05
        %v409 = vadd.f32 %v401, 1e-05
        %v410 = vrsqrt.pop %v402
        %v411 = vrsqrt.pop %v403
        %v412 = vrsqrt.pop %v404
        %v413 = vrsqrt.pop %v405
        %v414 = vrsqrt.pop %v406
        %v415 = vrsqrt.pop %v407
        %v416 = vrsqrt.pop %v408
        %v417 = vrsqrt.pop %v409
        %v418 = vld [vmem:[%s1] sm:$0x1]
        %v420 = vlaneseq
        %v421 = vshrl.u32 %v420, 7
        %v422 = vsub.s32 0, %v421
        %v423 = vrot.slane %v418, %v422
        %v425 = vmul.f32 %v410, %v423
        %v426 = vmul.f32 %v411, %v423
        %v427 = vmul.f32 %v412, %v423
        %v428 = vmul.f32 %v413, %v423
        %v429 = vmul.f32 %v414, %v423
        %v430 = vmul.f32 %v415, %v423
        %v431 = vmul.f32 %v416, %v423
        %v432 = vmul.f32 %v417, %v423
        %v433 = vmul.f32 %v362, %v425
        %v434 = vmul.f32 %v363, %v426
        %v435 = vmul.f32 %v364, %v427
        %v436 = vmul.f32 %v365, %v428
        %v437 = vmul.f32 %v366, %v429
        %v438 = vmul.f32 %v367, %v430
        %v439 = vmul.f32 %v368, %v431
        %v440 = vmul.f32 %v369, %v432
        %v441 = vld [vmem:[%s2] sm:$0x1]
        %v443 = vlaneseq
        %v444 = vshrl.u32 %v443, 7
        %v445 = vsub.s32 0, %v444
        %v446 = vrot.slane %v441, %v445
        %v448 = vadd.f32 %v433, %v446
        %v449 = vadd.f32 %v434, %v446
        %v450 = vadd.f32 %v435, %v446
        %v451 = vadd.f32 %v436, %v446
        %v452 = vadd.f32 %v437, %v446
        %v453 = vadd.f32 %v438, %v446
        %v454 = vadd.f32 %v439, %v446
        %v455 = vadd.f32 %v440, %v446
        %v456 = vpack.c.bf16 %v449, %v448
        %v457 = vpack.c.bf16 %v451, %v450
        %v458 = vpack.c.bf16 %v453, %v452
        %v459 = vpack.c.bf16 %v455, %v454
        %v460 = vld [vmem:[#allocation5] sm:$0xff]
        %v461 = vld [vmem:[#allocation5 + $0x8] sm:$0xff]
        %v462 = vld [vmem:[#allocation5 + $0x10] sm:$0xff]
        %v463 = vld [vmem:[#allocation5 + $0x18] sm:$0xff]
        %v464 = vld [vmem:[#allocation5 + $0x20] sm:$0xff]
        %v465 = vld [vmem:[#allocation5 + $0x28] sm:$0xff]
        %v466 = vld [vmem:[#allocation5 + $0x30] sm:$0xff]
        %v467 = vld [vmem:[#allocation5 + $0x38] sm:$0xff]
        %v468 = vld [vmem:[#allocation5 + $0x40] sm:$0xff]
        %v469 = vld [vmem:[#allocation5 + $0x48] sm:$0xff]
        %v470 = vld [vmem:[#allocation5 + $0x50] sm:$0xff]
        %v471 = vld [vmem:[#allocation5 + $0x58] sm:$0xff]
        %v472 = vld [vmem:[#allocation5 + $0x60] sm:$0xff]
        %v473 = vld [vmem:[#allocation5 + $0x68] sm:$0xff]
        %v474 = vld [vmem:[#allocation5 + $0x70] sm:$0xff]
        %v475 = vld [vmem:[#allocation5 + $0x78] sm:$0xff]
        %v476 = vld [vmem:[#allocation5 + $0x80] sm:$0xff]
        %v477 = vld [vmem:[#allocation5 + $0x88] sm:$0xff]
        %v478 = vld [vmem:[#allocation5 + $0x90] sm:$0xff]
        %v479 = vld [vmem:[#allocation5 + $0x98] sm:$0xff]
        %v480 = vld [vmem:[#allocation5 + $0xa0] sm:$0xff]
        %v481 = vld [vmem:[#allocation5 + $0xa8] sm:$0xff]
        %v482 = vld [vmem:[#allocation5 + $0xb0] sm:$0xff]
        %v483 = vld [vmem:[#allocation5 + $0xb8] sm:$0xff]
        %v484 = vld [vmem:[#allocation5 + $0xc0] sm:$0xff]
        %v485 = vld [vmem:[#allocation5 + $0xc8] sm:$0xff]
        %v486 = vld [vmem:[#allocation5 + $0xd0] sm:$0xff]
        %v487 = vld [vmem:[#allocation5 + $0xd8] sm:$0xff]
        %v488 = vld [vmem:[#allocation5 + $0xe0] sm:$0xff]
        %v489 = vld [vmem:[#allocation5 + $0xe8] sm:$0xff]
        %v490 = vld [vmem:[#allocation5 + $0xf0] sm:$0xff]
        %v491 = vld [vmem:[#allocation5 + $0xf8] sm:$0xff]
        %v492 = vld [vmem:[%s4] sm:$0xf]
        %v494 = vlaneseq
        %v495 = vshrl.u32 %v494, 7
        %v496 = vsub.s32 0, %v495
        %v497 = vrot.slane %v492, %v496
        %v498 = vlaneseq
        %v499 = vshrl.u32 %v498, 7
        %v500 = vsub.s32 1, %v499
        %v501 = vrot.slane %v492, %v500
        %v502 = vlaneseq
        %v503 = vshrl.u32 %v502, 7
        %v504 = vsub.s32 2, %v503
        %v505 = vrot.slane %v492, %v504
        %v506 = vlaneseq
        %v507 = vshrl.u32 %v506, 7
        %v508 = vsub.s32 3, %v507
        %v509 = vrot.slane %v492, %v508
        %v546 = vunpack.c.l.b16 %v460
        %v547 = vunpack.c.h.b16 %v460
        %v548 = vunpack.c.l.b16 %v461
        %v549 = vunpack.c.h.b16 %v461
        %v550 = vunpack.c.l.b16 %v462
        %v551 = vunpack.c.h.b16 %v462
        %v552 = vunpack.c.l.b16 %v463
        %v553 = vunpack.c.h.b16 %v463
        %v554 = vunpack.c.l.b16 %v464
        %v555 = vunpack.c.h.b16 %v464
        %v556 = vunpack.c.l.b16 %v465
        %v557 = vunpack.c.h.b16 %v465
        %v558 = vunpack.c.l.b16 %v466
        %v559 = vunpack.c.h.b16 %v466
        %v560 = vunpack.c.l.b16 %v467
        %v561 = vunpack.c.h.b16 %v467
        %v562 = vunpack.c.l.b16 %v468
        %v563 = vunpack.c.h.b16 %v468
        %v564 = vunpack.c.l.b16 %v469
        %v565 = vunpack.c.h.b16 %v469
        %v566 = vunpack.c.l.b16 %v470
        %v567 = vunpack.c.h.b16 %v470
        %v568 = vunpack.c.l.b16 %v471
        %v569 = vunpack.c.h.b16 %v471
        %v570 = vunpack.c.l.b16 %v472
        %v571 = vunpack.c.h.b16 %v472
        %v572 = vunpack.c.l.b16 %v473
        %v573 = vunpack.c.h.b16 %v473
        %v574 = vunpack.c.l.b16 %v474
        %v575 = vunpack.c.h.b16 %v474
        %v576 = vunpack.c.l.b16 %v475
        %v577 = vunpack.c.h.b16 %v475
        %v578 = vunpack.c.l.b16 %v476
        %v579 = vunpack.c.h.b16 %v476
        %v580 = vunpack.c.l.b16 %v477
        %v581 = vunpack.c.h.b16 %v477
        %v582 = vunpack.c.l.b16 %v478
        %v583 = vunpack.c.h.b16 %v478
        %v584 = vunpack.c.l.b16 %v479
        %v585 = vunpack.c.h.b16 %v479
        %v586 = vunpack.c.l.b16 %v480
        %v587 = vunpack.c.h.b16 %v480
        %v588 = vunpack.c.l.b16 %v481
        %v589 = vunpack.c.h.b16 %v481
        %v590 = vunpack.c.l.b16 %v482
        %v591 = vunpack.c.h.b16 %v482
        %v592 = vunpack.c.l.b16 %v483
        %v593 = vunpack.c.h.b16 %v483
        %v594 = vunpack.c.l.b16 %v484
        %v595 = vunpack.c.h.b16 %v484
        %v596 = vunpack.c.l.b16 %v485
        %v597 = vunpack.c.h.b16 %v485
        %v598 = vunpack.c.l.b16 %v486
        %v599 = vunpack.c.h.b16 %v486
        %v600 = vunpack.c.l.b16 %v487
        %v601 = vunpack.c.h.b16 %v487
        %v602 = vunpack.c.l.b16 %v488
        %v603 = vunpack.c.h.b16 %v488
        %v604 = vunpack.c.l.b16 %v489
        %v605 = vunpack.c.h.b16 %v489
        %v606 = vunpack.c.l.b16 %v490
        %v607 = vunpack.c.h.b16 %v490
        %v608 = vunpack.c.l.b16 %v491
        %v609 = vunpack.c.h.b16 %v491
        %v610 = vpack.c.b16 %v550, %v546
        %v611 = vpack.c.b16 %v551, %v547
        %v612 = vpack.c.b16 %v552, %v548
        %v613 = vpack.c.b16 %v553, %v549
        %v614 = vpack.c.b16 %v558, %v554
        %v615 = vpack.c.b16 %v559, %v555
        %v616 = vpack.c.b16 %v560, %v556
        %v617 = vpack.c.b16 %v561, %v557
        %v618 = vpack.c.b16 %v566, %v562
        %v619 = vpack.c.b16 %v567, %v563
        %v620 = vpack.c.b16 %v568, %v564
        %v621 = vpack.c.b16 %v569, %v565
        %v622 = vpack.c.b16 %v574, %v570
        %v623 = vpack.c.b16 %v575, %v571
        %v624 = vpack.c.b16 %v576, %v572
        %v625 = vpack.c.b16 %v577, %v573
        %v626 = vpack.c.b16 %v582, %v578
        %v627 = vpack.c.b16 %v583, %v579
        %v628 = vpack.c.b16 %v584, %v580
        %v629 = vpack.c.b16 %v585, %v581
        %v630 = vpack.c.b16 %v590, %v586
        %v631 = vpack.c.b16 %v591, %v587
        %v632 = vpack.c.b16 %v592, %v588
        %v633 = vpack.c.b16 %v593, %v589
        %v634 = vpack.c.b16 %v598, %v594
        %v635 = vpack.c.b16 %v599, %v595
        %v636 = vpack.c.b16 %v600, %v596
        %v637 = vpack.c.b16 %v601, %v597
        %v638 = vpack.c.b16 %v606, %v602
        %v639 = vpack.c.b16 %v607, %v603
        %v640 = vpack.c.b16 %v608, %v604
        %v641 = vpack.c.b16 %v609, %v605
        %674 = vmatprep.subr.bf16.mxu0 %v639
        %675 = vmatpush1.bf16.msra.mxu0 %v638
        %676 = vmatprep.subr.bf16.mxu0 %v635
        %677 = vmatpush1.bf16.msra.mxu0 %v634
        %678 = vmatprep.subr.bf16.mxu0 %v631
        %679 = vmatpush1.bf16.msra.mxu0 %v630
        %680 = vmatprep.subr.bf16.mxu0 %v627
        %681 = vmatpush1.bf16.msra.mxu0 %v626
        %682 = vmatprep.subr.bf16.mxu0 %v623
        %683 = vmatpush1.bf16.msra.mxu0 %v622
        %684 = vmatprep.subr.bf16.mxu0 %v619
        %685 = vmatpush1.bf16.msra.mxu0 %v618
        %686 = vmatprep.subr.bf16.mxu0 %v615
        %687 = vmatpush1.bf16.msra.mxu0 %v614
        %688 = vmatprep.subr.bf16.mxu0 %v611
        %689 = vmatpush1.bf16.msra.mxu0 %v610
        %690 = vmatprep.subr.bf16.mxu0 0
        %691 = vmatpush2.bf16.msra.mxu0 0
        %692 = vmatprep.subr.bf16.mxu0 0
        %693 = vmatpush2.bf16.msra.mxu0 0
        %694 = vmatprep.subr.bf16.mxu0 0
        %695 = vmatpush2.bf16.msra.mxu0 0
        %696 = vmatprep.subr.bf16.mxu0 0
        %697 = vmatpush2.bf16.msra.mxu0 0
        %698 = vmatprep.subr.bf16.mxu0 0
        %699 = vmatpush2.bf16.msra.mxu0 0
        %700 = vmatprep.subr.bf16.mxu0 0
        %701 = vmatpush2.bf16.msra.mxu0 0
        %702 = vmatprep.subr.bf16.mxu0 0
        %703 = vmatpush2.bf16.msra.mxu0 0
        %704 = vmatprep.subr.bf16.mxu0 0
        %705 = vmatpush2.bf16.msra.mxu0 0
        %706 = vmatprep.mubr.bf16.mxu0 0
        %707 = vmatmul.mubr.bf16.gmra.mxu0 %v456
        %v708 = vpop.f32.mrf.mxu0
        %v709 = vadd.f32 %v497, %v708
        %v710 = vpop.f32.mrf.mxu0
        %v711 = vadd.f32 %v501, %v710
        %v712 = vpop.f32.mrf.mxu0
        %v713 = vadd.f32 %v497, %v712
        %v714 = vpop.f32.mrf.mxu0
        %v715 = vadd.f32 %v501, %v714
        %716 = vmatprep.mubr.bf16.mxu0 0
        %717 = vmatmul.mubr.bf16.gmra.mxu0 %v457
        %v718 = vpop.f32.mrf.mxu0
        %v719 = vadd.f32 %v497, %v718
        %v720 = vpop.f32.mrf.mxu0
        %v721 = vadd.f32 %v501, %v720
        %v722 = vpop.f32.mrf.mxu0
        %v723 = vadd.f32 %v497, %v722
        %v724 = vpop.f32.mrf.mxu0
        %v725 = vadd.f32 %v501, %v724
        %726 = vmatprep.mubr.bf16.mxu0 0
        %727 = vmatmul.mubr.bf16.gmra.mxu0 %v458
        %v728 = vpop.f32.mrf.mxu0
        %v729 = vadd.f32 %v497, %v728
        %v730 = vpop.f32.mrf.mxu0
        %v731 = vadd.f32 %v501, %v730
        %v732 = vpop.f32.mrf.mxu0
        %v733 = vadd.f32 %v497, %v732
        %v734 = vpop.f32.mrf.mxu0
        %v735 = vadd.f32 %v501, %v734
        %736 = vmatprep.mubr.bf16.mxu0 0
        %737 = vmatmul.mubr.bf16.gmra.mxu0 %v459
        %v738 = vpop.f32.mrf.mxu0
        %v739 = vadd.f32 %v497, %v738
        %v740 = vpop.f32.mrf.mxu0
        %v741 = vadd.f32 %v501, %v740
        %v742 = vpop.f32.mrf.mxu0
        %v743 = vadd.f32 %v497, %v742
        %v744 = vpop.f32.mrf.mxu0
        %v745 = vadd.f32 %v501, %v744
        %746 = vdwg.mxu0
        %747 = vmatprep.subr.bf16.mxu0 %v641
        %748 = vmatpush1.bf16.msra.mxu0 %v640
        %749 = vmatprep.subr.bf16.mxu0 %v637
        %750 = vmatpush1.bf16.msra.mxu0 %v636
        %751 = vmatprep.subr.bf16.mxu0 %v633
        %752 = vmatpush1.bf16.msra.mxu0 %v632
        %753 = vmatprep.subr.bf16.mxu0 %v629
        %754 = vmatpush1.bf16.msra.mxu0 %v628
        %755 = vmatprep.subr.bf16.mxu0 %v625
        %756 = vmatpush1.bf16.msra.mxu0 %v624
        %757 = vmatprep.subr.bf16.mxu0 %v621
        %758 = vmatpush1.bf16.msra.mxu0 %v620
        %759 = vmatprep.subr.bf16.mxu0 %v617
        %760 = vmatpush1.bf16.msra.mxu0 %v616
        %761 = vmatprep.subr.bf16.mxu0 %v613
        %762 = vmatpush1.bf16.msra.mxu0 %v612
        %763 = vmatprep.subr.bf16.mxu0 0
        %764 = vmatpush2.bf16.msra.mxu0 0
        %765 = vmatprep.subr.bf16.mxu0 0
        %766 = vmatpush2.bf16.msra.mxu0 0
        %767 = vmatprep.subr.bf16.mxu0 0
        %768 = vmatpush2.bf16.msra.mxu0 0
        %769 = vmatprep.subr.bf16.mxu0 0
        %770 = vmatpush2.bf16.msra.mxu0 0
        %771 = vmatprep.subr.bf16.mxu0 0
        %772 = vmatpush2.bf16.msra.mxu0 0
        %773 = vmatprep.subr.bf16.mxu0 0
        %774 = vmatpush2.bf16.msra.mxu0 0
        %775 = vmatprep.subr.bf16.mxu0 0
        %776 = vmatpush2.bf16.msra.mxu0 0
        %777 = vmatprep.subr.bf16.mxu0 0
        %778 = vmatpush2.bf16.msra.mxu0 0
        %779 = vmatprep.mubr.bf16.mxu0 0
        %780 = vmatmul.mubr.bf16.gmra.mxu0 %v456
        %v781 = vpop.f32.mrf.mxu0
        %v782 = vadd.f32 %v505, %v781
        %v783 = vpop.f32.mrf.mxu0
        %v784 = vadd.f32 %v509, %v783
        %v785 = vpop.f32.mrf.mxu0
        %v786 = vadd.f32 %v505, %v785
        %v787 = vpop.f32.mrf.mxu0
        %v788 = vadd.f32 %v509, %v787
        %789 = vmatprep.mubr.bf16.mxu0 0
        %790 = vmatmul.mubr.bf16.gmra.mxu0 %v457
        %v791 = vpop.f32.mrf.mxu0
        %v792 = vadd.f32 %v505, %v791
        %v793 = vpop.f32.mrf.mxu0
        %v794 = vadd.f32 %v509, %v793
        %v795 = vpop.f32.mrf.mxu0
        %v796 = vadd.f32 %v505, %v795
        %v797 = vpop.f32.mrf.mxu0
        %v798 = vadd.f32 %v509, %v797
        %799 = vmatprep.mubr.bf16.mxu0 0
        %800 = vmatmul.mubr.bf16.gmra.mxu0 %v458
        %v801 = vpop.f32.mrf.mxu0
        %v802 = vadd.f32 %v505, %v801
        %v803 = vpop.f32.mrf.mxu0
        %v804 = vadd.f32 %v509, %v803
        %v805 = vpop.f32.mrf.mxu0
        %v806 = vadd.f32 %v505, %v805
        %v807 = vpop.f32.mrf.mxu0
        %v808 = vadd.f32 %v509, %v807
        %809 = vmatprep.mubr.bf16.mxu0 0
        %810 = vmatmul.mubr.bf16.gmra.mxu0 %v459
        %v811 = vpop.f32.mrf.mxu0
        %v812 = vadd.f32 %v505, %v811
        %v813 = vpop.f32.mrf.mxu0
        %v814 = vadd.f32 %v509, %v813
        %v815 = vpop.f32.mrf.mxu0
        %v816 = vadd.f32 %v505, %v815
        %v817 = vpop.f32.mrf.mxu0
        %v818 = vadd.f32 %v509, %v817
        %819 = vdwg.mxu0
        %v820 = vmax.f32 %v709, 0.0
        %v821 = vmax.f32 %v711, 0.0
        %v822 = vmax.f32 %v782, 0.0
        %v823 = vmax.f32 %v784, 0.0
        %v824 = vmax.f32 %v713, 0.0
        %v825 = vmax.f32 %v715, 0.0
        %v826 = vmax.f32 %v786, 0.0
        %v827 = vmax.f32 %v788, 0.0
        %v828 = vmax.f32 %v719, 0.0
        %v829 = vmax.f32 %v721, 0.0
        %v830 = vmax.f32 %v792, 0.0
        %v831 = vmax.f32 %v794, 0.0
        %v832 = vmax.f32 %v723, 0.0
        %v833 = vmax.f32 %v725, 0.0
        %v834 = vmax.f32 %v796, 0.0
        %v835 = vmax.f32 %v798, 0.0
        %v836 = vmax.f32 %v729, 0.0
        %v837 = vmax.f32 %v731, 0.0
        %v838 = vmax.f32 %v802, 0.0
        %v839 = vmax.f32 %v804, 0.0
        %v840 = vmax.f32 %v733, 0.0
        %v841 = vmax.f32 %v735, 0.0
        %v842 = vmax.f32 %v806, 0.0
        %v843 = vmax.f32 %v808, 0.0
        %v844 = vmax.f32 %v739, 0.0
        %v845 = vmax.f32 %v741, 0.0
        %v846 = vmax.f32 %v812, 0.0
        %v847 = vmax.f32 %v814, 0.0
        %v848 = vmax.f32 %v743, 0.0
        %v849 = vmax.f32 %v745, 0.0
        %v850 = vmax.f32 %v816, 0.0
        %v851 = vmax.f32 %v818, 0.0
        %v852 = vpack.c.bf16 %v824, %v820
        %v853 = vpack.c.bf16 %v825, %v821
        %v854 = vpack.c.bf16 %v826, %v822
        %v855 = vpack.c.bf16 %v827, %v823
        %v856 = vpack.c.bf16 %v832, %v828
        %v857 = vpack.c.bf16 %v833, %v829
        %v858 = vpack.c.bf16 %v834, %v830
        %v859 = vpack.c.bf16 %v835, %v831
        %v860 = vpack.c.bf16 %v840, %v836
        %v861 = vpack.c.bf16 %v841, %v837
        %v862 = vpack.c.bf16 %v842, %v838
        %v863 = vpack.c.bf16 %v843, %v839
        %v864 = vpack.c.bf16 %v848, %v844
        %v865 = vpack.c.bf16 %v849, %v845
        %v866 = vpack.c.bf16 %v850, %v846
        %v867 = vpack.c.bf16 %v851, %v847
        %v868 = vld [vmem:[#allocation7] sm:$0xf]
        %v869 = vld [vmem:[#allocation7 + $0x4] sm:$0xf]
        %v870 = vld [vmem:[#allocation7 + $0x8] sm:$0xf]
        %v871 = vld [vmem:[#allocation7 + $0xc] sm:$0xf]
        %v872 = vld [vmem:[#allocation7 + $0x10] sm:$0xf]
        %v873 = vld [vmem:[#allocation7 + $0x14] sm:$0xf]
        %v874 = vld [vmem:[#allocation7 + $0x18] sm:$0xf]
        %v875 = vld [vmem:[#allocation7 + $0x1c] sm:$0xf]
        %v876 = vld [vmem:[#allocation7 + $0x20] sm:$0xf]
        %v877 = vld [vmem:[#allocation7 + $0x24] sm:$0xf]
        %v878 = vld [vmem:[#allocation7 + $0x28] sm:$0xf]
        %v879 = vld [vmem:[#allocation7 + $0x2c] sm:$0xf]
        %v880 = vld [vmem:[#allocation7 + $0x30] sm:$0xf]
        %v881 = vld [vmem:[#allocation7 + $0x34] sm:$0xf]
        %v882 = vld [vmem:[#allocation7 + $0x38] sm:$0xf]
        %v883 = vld [vmem:[#allocation7 + $0x3c] sm:$0xf]
        %v884 = vld [vmem:[#allocation7 + $0x40] sm:$0xf]
        %v885 = vld [vmem:[#allocation7 + $0x44] sm:$0xf]
        %v886 = vld [vmem:[#allocation7 + $0x48] sm:$0xf]
        %v887 = vld [vmem:[#allocation7 + $0x4c] sm:$0xf]
        %v888 = vld [vmem:[#allocation7 + $0x50] sm:$0xf]
        %v889 = vld [vmem:[#allocation7 + $0x54] sm:$0xf]
        %v890 = vld [vmem:[#allocation7 + $0x58] sm:$0xf]
        %v891 = vld [vmem:[#allocation7 + $0x5c] sm:$0xf]
        %v892 = vld [vmem:[#allocation7 + $0x60] sm:$0xf]
        %v893 = vld [vmem:[#allocation7 + $0x64] sm:$0xf]
        %v894 = vld [vmem:[#allocation7 + $0x68] sm:$0xf]
        %v895 = vld [vmem:[#allocation7 + $0x6c] sm:$0xf]
        %v896 = vld [vmem:[#allocation7 + $0x70] sm:$0xf]
        %v897 = vld [vmem:[#allocation7 + $0x74] sm:$0xf]
        %v898 = vld [vmem:[#allocation7 + $0x78] sm:$0xf]
        %v899 = vld [vmem:[#allocation7 + $0x7c] sm:$0xf]
        %v900 = vld [vmem:[#allocation7 + $0x80] sm:$0xf]
        %v901 = vld [vmem:[#allocation7 + $0x84] sm:$0xf]
        %v902 = vld [vmem:[#allocation7 + $0x88] sm:$0xf]
        %v903 = vld [vmem:[#allocation7 + $0x8c] sm:$0xf]
        %v904 = vld [vmem:[#allocation7 + $0x90] sm:$0xf]
        %v905 = vld [vmem:[#allocation7 + $0x94] sm:$0xf]
        %v906 = vld [vmem:[#allocation7 + $0x98] sm:$0xf]
        %v907 = vld [vmem:[#allocation7 + $0x9c] sm:$0xf]
        %v908 = vld [vmem:[#allocation7 + $0xa0] sm:$0xf]
        %v909 = vld [vmem:[#allocation7 + $0xa4] sm:$0xf]
        %v910 = vld [vmem:[#allocation7 + $0xa8] sm:$0xf]
        %v911 = vld [vmem:[#allocation7 + $0xac] sm:$0xf]
        %v912 = vld [vmem:[#allocation7 + $0xb0] sm:$0xf]
        %v913 = vld [vmem:[#allocation7 + $0xb4] sm:$0xf]
        %v914 = vld [vmem:[#allocation7 + $0xb8] sm:$0xf]
        %v915 = vld [vmem:[#allocation7 + $0xbc] sm:$0xf]
        %v916 = vld [vmem:[#allocation7 + $0xc0] sm:$0xf]
        %v917 = vld [vmem:[#allocation7 + $0xc4] sm:$0xf]
        %v918 = vld [vmem:[#allocation7 + $0xc8] sm:$0xf]
        %v919 = vld [vmem:[#allocation7 + $0xcc] sm:$0xf]
        %v920 = vld [vmem:[#allocation7 + $0xd0] sm:$0xf]
        %v921 = vld [vmem:[#allocation7 + $0xd4] sm:$0xf]
        %v922 = vld [vmem:[#allocation7 + $0xd8] sm:$0xf]
        %v923 = vld [vmem:[#allocation7 + $0xdc] sm:$0xf]
        %v924 = vld [vmem:[#allocation7 + $0xe0] sm:$0xf]
        %v925 = vld [vmem:[#allocation7 + $0xe4] sm:$0xf]
        %v926 = vld [vmem:[#allocation7 + $0xe8] sm:$0xf]
        %v927 = vld [vmem:[#allocation7 + $0xec] sm:$0xf]
        %v928 = vld [vmem:[#allocation7 + $0xf0] sm:$0xf]
        %v929 = vld [vmem:[#allocation7 + $0xf4] sm:$0xf]
        %v930 = vld [vmem:[#allocation7 + $0xf8] sm:$0xf]
        %v931 = vld [vmem:[#allocation7 + $0xfc] sm:$0xf]
        %v932 = vld [vmem:[%s6] sm:$0x1]
        %v934 = vlaneseq
        %v935 = vshrl.u32 %v934, 7
        %v936 = vsub.s32 0, %v935
        %v937 = vrot.slane %v932, %v936
        %v1003 = vunpack.c.l.b16 %v868
        %v1004 = vunpack.c.l.b16 %v869
        %v1005 = vunpack.c.l.b16 %v870
        %v1006 = vunpack.c.l.b16 %v871
        %v1007 = vunpack.c.l.b16 %v872
        %v1008 = vunpack.c.l.b16 %v873
        %v1009 = vunpack.c.l.b16 %v874
        %v1010 = vunpack.c.l.b16 %v875
        %v1011 = vunpack.c.l.b16 %v876
        %v1012 = vunpack.c.l.b16 %v877
        %v1013 = vunpack.c.l.b16 %v878
        %v1014 = vunpack.c.l.b16 %v879
        %v1015 = vunpack.c.l.b16 %v880
        %v1016 = vunpack.c.l.b16 %v881
        %v1017 = vunpack.c.l.b16 %v882
        %v1018 = vunpack.c.l.b16 %v883
        %v1019 = vunpack.c.l.b16 %v884
        %v1020 = vunpack.c.l.b16 %v885
        %v1021 = vunpack.c.l.b16 %v886
        %v1022 = vunpack.c.l.b16 %v887
        %v1023 = vunpack.c.l.b16 %v888
        %v1024 = vunpack.c.l.b16 %v889
        %v1025 = vunpack.c.l.b16 %v890
        %v1026 = vunpack.c.l.b16 %v891
        %v1027 = vunpack.c.l.b16 %v892
        %v1028 = vunpack.c.l.b16 %v893
        %v1029 = vunpack.c.l.b16 %v894
        %v1030 = vunpack.c.l.b16 %v895
        %v1031 = vunpack.c.l.b16 %v896
        %v1032 = vunpack.c.l.b16 %v897
        %v1033 = vunpack.c.l.b16 %v898
        %v1034 = vunpack.c.l.b16 %v899
        %v1035 = vunpack.c.l.b16 %v900
        %v1036 = vunpack.c.l.b16 %v901
        %v1037 = vunpack.c.l.b16 %v902
        %v1038 = vunpack.c.l.b16 %v903
        %v1039 = vunpack.c.l.b16 %v904
        %v1040 = vunpack.c.l.b16 %v905
        %v1041 = vunpack.c.l.b16 %v906
        %v1042 = vunpack.c.l.b16 %v907
        %v1043 = vunpack.c.l.b16 %v908
        %v1044 = vunpack.c.l.b16 %v909
        %v1045 = vunpack.c.l.b16 %v910
        %v1046 = vunpack.c.l.b16 %v911
        %v1047 = vunpack.c.l.b16 %v912
        %v1048 = vunpack.c.l.b16 %v913
        %v1049 = vunpack.c.l.b16 %v914
        %v1050 = vunpack.c.l.b16 %v915
        %v1051 = vunpack.c.l.b16 %v916
        %v1052 = vunpack.c.l.b16 %v917
        %v1053 = vunpack.c.l.b16 %v918
        %v1054 = vunpack.c.l.b16 %v919
        %v1055 = vunpack.c.l.b16 %v920
        %v1056 = vunpack.c.l.b16 %v921
        %v1057 = vunpack.c.l.b16 %v922
        %v1058 = vunpack.c.l.b16 %v923
        %v1059 = vunpack.c.l.b16 %v924
        %v1060 = vunpack.c.l.b16 %v925
        %v1061 = vunpack.c.l.b16 %v926
        %v1062 = vunpack.c.l.b16 %v927
        %v1063 = vunpack.c.l.b16 %v928
        %v1064 = vunpack.c.l.b16 %v929
        %v1065 = vunpack.c.l.b16 %v930
        %v1066 = vunpack.c.l.b16 %v931
        %v1067 = vpack.c.b16 %v1004, %v1003
        %v1068 = vpack.c.b16 %v1006, %v1005
        %v1069 = vpack.c.b16 %v1008, %v1007
        %v1070 = vpack.c.b16 %v1010, %v1009
        %v1071 = vpack.c.b16 %v1012, %v1011
        %v1072 = vpack.c.b16 %v1014, %v1013
        %v1073 = vpack.c.b16 %v1016, %v1015
        %v1074 = vpack.c.b16 %v1018, %v1017
        %v1075 = vpack.c.b16 %v1020, %v1019
        %v1076 = vpack.c.b16 %v1022, %v1021
        %v1077 = vpack.c.b16 %v1024, %v1023
        %v1078 = vpack.c.b16 %v1026, %v1025
        %v1079 = vpack.c.b16 %v1028, %v1027
        %v1080 = vpack.c.b16 %v1030, %v1029
        %v1081 = vpack.c.b16 %v1032, %v1031
        %v1082 = vpack.c.b16 %v1034, %v1033
        %v1083 = vpack.c.b16 %v1036, %v1035
        %v1084 = vpack.c.b16 %v1038, %v1037
        %v1085 = vpack.c.b16 %v1040, %v1039
        %v1086 = vpack.c.b16 %v1042, %v1041
        %v1087 = vpack.c.b16 %v1044, %v1043
        %v1088 = vpack.c.b16 %v1046, %v1045
        %v1089 = vpack.c.b16 %v1048, %v1047
        %v1090 = vpack.c.b16 %v1050, %v1049
        %v1091 = vpack.c.b16 %v1052, %v1051
        %v1092 = vpack.c.b16 %v1054, %v1053
        %v1093 = vpack.c.b16 %v1056, %v1055
        %v1094 = vpack.c.b16 %v1058, %v1057
        %v1095 = vpack.c.b16 %v1060, %v1059
        %v1096 = vpack.c.b16 %v1062, %v1061
        %v1097 = vpack.c.b16 %v1064, %v1063
        %v1098 = vpack.c.b16 %v1066, %v1065
        %1131 = vmatprep.subr.bf16.mxu0 0
        %1132 = vmatpush1.bf16.msra.mxu0 %v1074
        %1133 = vmatprep.subr.bf16.mxu0 0
        %1134 = vmatpush1.bf16.msra.mxu0 %v1073
        %1135 = vmatprep.subr.bf16.mxu0 0
        %1136 = vmatpush1.bf16.msra.mxu0 %v1072
        %1137 = vmatprep.subr.bf16.mxu0 0
        %1138 = vmatpush1.bf16.msra.mxu0 %v1071
        %1139 = vmatprep.subr.bf16.mxu0 0
        %1140 = vmatpush1.bf16.msra.mxu0 %v1070
        %1141 = vmatprep.subr.bf16.mxu0 0
        %1142 = vmatpush1.bf16.msra.mxu0 %v1069
        %1143 = vmatprep.subr.bf16.mxu0 0
        %1144 = vmatpush1.bf16.msra.mxu0 %v1068
        %1145 = vmatprep.subr.bf16.mxu0 0
        %1146 = vmatpush1.bf16.msra.mxu0 %v1067
        %1147 = vmatprep.subr.bf16.mxu0 0
        %1148 = vmatpush2.bf16.msra.mxu0 %v1082
        %1149 = vmatprep.subr.bf16.mxu0 0
        %1150 = vmatpush2.bf16.msra.mxu0 %v1081
        %1151 = vmatprep.subr.bf16.mxu0 0
        %1152 = vmatpush2.bf16.msra.mxu0 %v1080
        %1153 = vmatprep.subr.bf16.mxu0 0
        %1154 = vmatpush2.bf16.msra.mxu0 %v1079
        %1155 = vmatprep.subr.bf16.mxu0 0
        %1156 = vmatpush2.bf16.msra.mxu0 %v1078
        %1157 = vmatprep.subr.bf16.mxu0 0
        %1158 = vmatpush2.bf16.msra.mxu0 %v1077
        %1159 = vmatprep.subr.bf16.mxu0 0
        %1160 = vmatpush2.bf16.msra.mxu0 %v1076
        %1161 = vmatprep.subr.bf16.mxu0 0
        %1162 = vmatpush2.bf16.msra.mxu0 %v1075
        %1163 = vmatprep.mubr.bf16.mxu0 %v853
        %1164 = vmatmul.mubr.bf16.gmra.mxu0 %v852
        %v1165 = vpop.f32.mrf.mxu0
        %v1166 = vadd.f32 %v937, %v1165
        %v1167 = vpop.f32.mrf.mxu0
        %v1168 = vpop.f32.mrf.mxu0
        %v1169 = vadd.f32 %v937, %v1168
        %v1170 = vpop.f32.mrf.mxu0
        %1171 = vmatprep.mubr.bf16.mxu0 %v857
        %1172 = vmatmul.mubr.bf16.gmra.mxu0 %v856
        %v1173 = vpop.f32.mrf.mxu0
        %v1174 = vadd.f32 %v937, %v1173
        %v1175 = vpop.f32.mrf.mxu0
        %v1176 = vpop.f32.mrf.mxu0
        %v1177 = vadd.f32 %v937, %v1176
        %v1178 = vpop.f32.mrf.mxu0
        %1179 = vmatprep.mubr.bf16.mxu0 %v861
        %1180 = vmatmul.mubr.bf16.gmra.mxu0 %v860
        %v1181 = vpop.f32.mrf.mxu0
        %v1182 = vadd.f32 %v937, %v1181
        %v1183 = vpop.f32.mrf.mxu0
        %v1184 = vpop.f32.mrf.mxu0
        %v1185 = vadd.f32 %v937, %v1184
        %v1186 = vpop.f32.mrf.mxu0
        %1187 = vmatprep.mubr.bf16.mxu0 %v865
        %1188 = vmatmul.mubr.bf16.gmra.mxu0 %v864
        %v1189 = vpop.f32.mrf.mxu0
        %v1190 = vadd.f32 %v937, %v1189
        %v1191 = vpop.f32.mrf.mxu0
        %v1192 = vpop.f32.mrf.mxu0
        %v1193 = vadd.f32 %v937, %v1192
        %v1194 = vpop.f32.mrf.mxu0
        %1195 = vdwg.mxu0
        %1196 = vmatprep.subr.bf16.mxu0 0
        %1197 = vmatpush1.bf16.msra.mxu0 %v1090
        %1198 = vmatprep.subr.bf16.mxu0 0
        %1199 = vmatpush1.bf16.msra.mxu0 %v1089
        %1200 = vmatprep.subr.bf16.mxu0 0
        %1201 = vmatpush1.bf16.msra.mxu0 %v1088
        %1202 = vmatprep.subr.bf16.mxu0 0
        %1203 = vmatpush1.bf16.msra.mxu0 %v1087
        %1204 = vmatprep.subr.bf16.mxu0 0
        %1205 = vmatpush1.bf16.msra.mxu0 %v1086
        %1206 = vmatprep.subr.bf16.mxu0 0
        %1207 = vmatpush1.bf16.msra.mxu0 %v1085
        %1208 = vmatprep.subr.bf16.mxu0 0
        %1209 = vmatpush1.bf16.msra.mxu0 %v1084
        %1210 = vmatprep.subr.bf16.mxu0 0
        %1211 = vmatpush1.bf16.msra.mxu0 %v1083
        %1212 = vmatprep.subr.bf16.mxu0 0
        %1213 = vmatpush2.bf16.msra.mxu0 %v1098
        %1214 = vmatprep.subr.bf16.mxu0 0
        %1215 = vmatpush2.bf16.msra.mxu0 %v1097
        %1216 = vmatprep.subr.bf16.mxu0 0
        %1217 = vmatpush2.bf16.msra.mxu0 %v1096
        %1218 = vmatprep.subr.bf16.mxu0 0
        %1219 = vmatpush2.bf16.msra.mxu0 %v1095
        %1220 = vmatprep.subr.bf16.mxu0 0
        %1221 = vmatpush2.bf16.msra.mxu0 %v1094
        %1222 = vmatprep.subr.bf16.mxu0 0
        %1223 = vmatpush2.bf16.msra.mxu0 %v1093
        %1224 = vmatprep.subr.bf16.mxu0 0
        %1225 = vmatpush2.bf16.msra.mxu0 %v1092
        %1226 = vmatprep.subr.bf16.mxu0 0
        %1227 = vmatpush2.bf16.msra.mxu0 %v1091
        %1228 = vmatprep.mubr.bf16.mxu0 %v855
        %1229 = vmatmul.mubr.bf16.gmra.mxu0 %v854
        %v1230 = vpop.f32.mrf.mxu0
        %v1231 = vadd.f32 %v1166, %v1230
        %v1232 = vpop.f32.mrf.mxu0
        %v1233 = vpop.f32.mrf.mxu0
        %v1234 = vadd.f32 %v1169, %v1233
        %v1235 = vpop.f32.mrf.mxu0
        %1236 = vmatprep.mubr.bf16.mxu0 %v859
        %1237 = vmatmul.mubr.bf16.gmra.mxu0 %v858
        %v1238 = vpop.f32.mrf.mxu0
        %v1239 = vadd.f32 %v1174, %v1238
        %v1240 = vpop.f32.mrf.mxu0
        %v1241 = vpop.f32.mrf.mxu0
        %v1242 = vadd.f32 %v1177, %v1241
        %v1243 = vpop.f32.mrf.mxu0
        %1244 = vmatprep.mubr.bf16.mxu0 %v863
        %1245 = vmatmul.mubr.bf16.gmra.mxu0 %v862
        %v1246 = vpop.f32.mrf.mxu0
        %v1247 = vadd.f32 %v1182, %v1246
        %v1248 = vpop.f32.mrf.mxu0
        %v1249 = vpop.f32.mrf.mxu0
        %v1250 = vadd.f32 %v1185, %v1249
        %v1251 = vpop.f32.mrf.mxu0
        %1252 = vmatprep.mubr.bf16.mxu0 %v867
        %1253 = vmatmul.mubr.bf16.gmra.mxu0 %v866
        %v1254 = vpop.f32.mrf.mxu0
        %v1255 = vadd.f32 %v1190, %v1254
        %v1256 = vpop.f32.mrf.mxu0
        %v1257 = vpop.f32.mrf.mxu0
        %v1258 = vadd.f32 %v1193, %v1257
        %v1259 = vpop.f32.mrf.mxu0
        %1260 = vdwg.mxu0
        %1261 = vst [vmem:[%s325] sm:$0xff] %v1231
        %1262 = vst [vmem:[%s325 + $0x8] sm:$0xff] %v1234
        %1263 = vst [vmem:[%s325 + $0x10] sm:$0xff] %v1239
        %1264 = vst [vmem:[%s325 + $0x18] sm:$0xff] %v1242
        %1265 = vst [vmem:[%s325 + $0x20] sm:$0xff] %v1247
        %1266 = vst [vmem:[%s325 + $0x28] sm:$0xff] %v1250
        %1267 = vst [vmem:[%s325 + $0x30] sm:$0xff] %v1255
        %1268 = vst [vmem:[%s325 + $0x38] sm:$0xff] %v1258
        %s1269 = sand.u32 %s185, 1
        %s1270 = scalar_lea.sflag [#allocation4], %s1269
        %s1271 = sand.u32 %s185, 1
        %s1272 = smul.addr %s1271, 64
        %s1273 = scalar_lea.vmem [#allocation8], %s1272
        // Predicated region
        $region61: #{tpu_custom_call.1} parent=47 // pred_check
          %p1274 = pneg %p195
        $region62: #{tpu_custom_call.1} parent=47 // pred_check_branch
          %1276 = sbr.rel (%p1274) target = $region64
        $region63: #{tpu_custom_call.1} parent=47 // pred_region
          %s1277 = smul.u32 8, %s25
          %s1279 = ssub.s32 1024, 1024
          %1280 = vsyncadd %s1270, %s1279
          %s1281 = smul.addr %s1277, 128
          %s1282 = scalar_lea.hbm %s7, %s1281
          %s1283 = sshll.u32 %s1273, 4
          %s1284 = int_to_ptr.vmem [resolvable:$true] %s1283
          %1289 = dma.vmem_to_hbm [thread:$0]  %s1284, 1024, %s1282, %s1270, 128, 128, 8
        $region64: #{tpu_custom_call.1} parent=47 // pred_fallthru
          _
      $region48: #{tpu_custom_call.1} parent=5 // pred_fallthru
        _
      %p1290 = scmp.le.s32.totalorder 2, %s20
      // Predicated region
      $region65: #{tpu_custom_call.1} parent=5 // pred_check
        %p1291 = pneg %p1290
      $region66: #{tpu_custom_call.1} parent=5 // pred_check_branch
        %1293 = sbr.rel (%p1291) target = $region68
      $region67: #{tpu_custom_call.1} parent=5 // pred_region
        %s1294 = ssub.s32 %s20, 2
        // Predicated region
        $region69: #{tpu_custom_call.1} parent=67 // pred_check
          %p1295 = pneg %p201
        $region70: #{tpu_custom_call.1} parent=67 // pred_check_branch
          %1297 = sbr.rel (%p1295) target = $region72
        $region71: #{tpu_custom_call.1} parent=67 // pred_region
          %s1298 = sand.u32 %s186, 1
          %s1299 = scalar_lea.sflag [#allocation4], %s1298
          %s1300 = sand.u32 %s186, 1
          %s1301 = smul.addr %s1300, 64
          %s1302 = scalar_lea.vmem [#allocation8], %s1301
          %1303 = dma.done %s1299, 1024
        $region72: #{tpu_custom_call.1} parent=67 // pred_fallthru
          _
      $region68: #{tpu_custom_call.1} parent=5 // pred_fallthru
        _
    $region6: #{tpu_custom_call.1} parent=1 // loop_footer
      %s24 = sadd.s32 1, %s20
    $region7: #{tpu_custom_call.1} parent=1 // loop_footer_branch
      %19 = sbr.rel target = $region3
    $region8: #{tpu_custom_call.1} parent=1 // loop_exit
      _
    %1304 = vsyncpa [#allocation3], 1
    %s1305 = scalar_lea.sflag [#allocation3], 1
    %1306 = vsyncpa %s1305, 1
    %1307 = vsyncpa [#allocation6], 1
    %1308 = vsyncpa [#allocation4], 1
    %s1309 = scalar_lea.sflag [#allocation4], 1
    %1310 = vsyncpa %s1309, 1

</llo_original>
